<compile_context>
chip_gen: v7x
topology: tpu7x:2x2x1
jax: 0.10.0
libtpu: 0.0.40
codegen_flags: <defaults>
</compile_context>

<pallas_src>
import math

import jax
import jax.numpy as jnp
from jax.experimental import pallas as pl
from jax.experimental.pallas import tpu as pltpu

C_IN, C_OUT = 3, 1
K, S, P = 3, 2, 1
H = W = 3
OH = (H - 1) * S - 2 * P + K          # 5
OW = (W - 1) * S - 2 * P + K          # 5

SCALES = (-0.6678060913085938, -0.5, -0.3228854517936707, -0.7302011585235596)
TOTAL_SCALE = float(math.prod(SCALES))  # fold 4 scalar muls into one constant


def _convt_tanh_scale_kernel(x_ref, w_ref, b_ref, o_ref):
    # x_ref: (1, C_IN, H, W)   f32 VMEM   raw NCHW input
    # w_ref: (C_IN*K*K,)       f32 SMEM   flattened ConvTranspose2d weight (C_OUT=1)
    # b_ref: (C_OUT,)          f32 SMEM   bias scalar
    # o_ref: (1, C_OUT, OH, OW) f32 VMEM  output
    xs = [x_ref[0, c] for c in range(C_IN)]          # three (H, W) planes, one vreg each

    def tap(kh, kw):
        # a[kh,kw][i,j] = sum_c w[c,0,kh,kw] * x[c,i,j]  (scalar-from-SMEM * vreg)
        acc = w_ref[kh * K + kw] * xs[0]
        for c in range(1, C_IN):
            acc = acc + w_ref[c * K * K + kh * K + kw] * xs[c]
        return acc                                    # (H, W)

    # Parity decomposition of the stride-2 transposed conv (crop folded in):
    #   y[2e,   2f  ] = a[1,1][e, f]
    #   y[2e,   2f+1] = a[1,0][e, f+1] + a[1,2][e, f]
    #   y[2o+1, 2f  ] = a[0,1][o+1, f] + a[2,1][o, f]
    #   y[2o+1, 2f+1] = a[0,0][o+1,f+1] + a[0,2][o+1,f] + a[2,0][o,f+1] + a[2,2][o,f]
    ee = tap(1, 1)                                            # (3, 3)
    eo = tap(1, 0)[:, 1:3] + tap(1, 2)[:, 0:2]                # (3, 2)
    oe = tap(0, 1)[1:3, :] + tap(2, 1)[0:2, :]                # (2, 3)
    oo = (tap(0, 0)[1:3, 1:3] + tap(0, 2)[1:3, 0:2]
          + tap(2, 0)[0:2, 1:3] + tap(2, 2)[0:2, 0:2])        # (2, 2)

    # Interleave parity blocks back into the (OH, OW) output (static concats).
    re = jnp.concatenate(
        [ee[:, 0:1], eo[:, 0:1], ee[:, 1:2], eo[:, 1:2], ee[:, 2:3]], axis=1)  # (3, 5)
    ro = jnp.concatenate(
        [oe[:, 0:1], oo[:, 0:1], oe[:, 1:2], oo[:, 1:2], oe[:, 2:3]], axis=1)  # (2, 5)
    y = jnp.concatenate(
        [re[0:1], ro[0:1], re[1:2], ro[1:2], re[2:3]], axis=0)                 # (5, 5)

    # Bias, tanh (EUP), fused scale, single store.
    y = jnp.tanh(y + b_ref[0]) * TOTAL_SCALE
    o_ref[0, 0] = y


@jax.jit
def model_forward(x, weight, bias):
    """x: (1, C_IN, H, W), weight: (C_IN, C_OUT, K, K), bias: (C_OUT,) -> (1, C_OUT, OH, OW)."""
    w_flat = weight.astype(jnp.float32).reshape(-1)   # contiguous flatten (free) -> SMEM scalars
    return pl.pallas_call(
        _convt_tanh_scale_kernel,
        out_shape=jax.ShapeDtypeStruct((1, C_OUT, OH, OW), jnp.float32),
        in_specs=[
            pl.BlockSpec(memory_space=pltpu.MemorySpace.VMEM),   # x (whole array)
            pl.BlockSpec(memory_space=pltpu.MemorySpace.SMEM),   # flattened weight (27 scalars)
            pl.BlockSpec(memory_space=pltpu.MemorySpace.SMEM),   # bias scalar
        ],
        out_specs=pl.BlockSpec(memory_space=pltpu.MemorySpace.VMEM),
        cost_estimate=pl.CostEstimate(flops=420, transcendentals=25, bytes_accessed=320),
    )(x.astype(jnp.float32), w_flat, bias.astype(jnp.float32))


def _reference(x, weight, bias):
    # Pure-JAX reference via conv_general_dilated (transposed-conv identity),
    # with the original sequential scalar multiplies (matches the PyTorch spec).
    w_conv = jnp.transpose(weight, (1, 0, 2, 3))[:, :, ::-1, ::-1]  # OIHW, flipped
    ref = jax.lax.conv_general_dilated(
        x, w_conv, window_strides=(1, 1),
        padding=[(K - 1 - P, K - 1 - P)] * 2,
        lhs_dilation=(S, S),
        dimension_numbers=("NCHW", "OIHW", "NCHW"))
    ref = ref + bias.reshape(1, C_OUT, 1, 1)
    ref = jnp.tanh(ref)
    for s in SCALES:
        ref = ref * s
    return ref


if __name__ == "__main__":
    key = jax.random.PRNGKey(0)
    k1, k2, k3 = jax.random.split(key, 3)
    x = jax.random.normal(k1, (1, C_IN, H, W), jnp.float32)
    weight = jax.random.normal(k2, (C_IN, C_OUT, K, K), jnp.float32) * 0.2
    bias = jax.random.normal(k3, (C_OUT,), jnp.float32) * 0.1

    out = jax.block_until_ready(model_forward(x, weight, bias))
    ref = jax.block_until_ready(_reference(x, weight, bias))

    assert out.shape == (1, C_OUT, OH, OW), out.shape
    assert jnp.allclose(out, ref, atol=1e-5, rtol=1e-5), (out, ref)
    print("KERNEL_OK")
</pallas_src>

<mosaic_0001>
module attributes {stable_mosaic.version = 11 : i64} {
  func.func @_convt_tanh_scale_kernel(%arg0: memref<1x3x3x3xf32, #tpu.memory_space<vmem>>, %arg1: memref<27xf32, #tpu.memory_space<smem>>, %arg2: memref<1xf32, #tpu.memory_space<smem>>, %arg3: memref<1x1x5x5xf32, #tpu.memory_space<vmem>>) attributes {dimension_semantics = [], scalar_prefetch = 0 : i64, scratch_operands = 0 : i64, tpu.core_type = #tpu.core_type<tc>} {
    %c0 = arith.constant 0 : index
    %c0_0 = arith.constant 0 : index
    %c0_1 = arith.constant 0 : index
    %c0_2 = arith.constant 0 : index
    %0 = vector.load %arg0[%c0, %c0_0, %c0_1, %c0_2] : memref<1x3x3x3xf32, #tpu.memory_space<vmem>>, vector<1x1x3x3xf32>
    %1 = vector.shape_cast %0 : vector<1x1x3x3xf32> to vector<3x3xf32>
    %c0_3 = arith.constant 0 : index
    %c1 = arith.constant 1 : index
    %c0_4 = arith.constant 0 : index
    %c0_5 = arith.constant 0 : index
    %2 = vector.load %arg0[%c0_3, %c1, %c0_4, %c0_5] : memref<1x3x3x3xf32, #tpu.memory_space<vmem>>, vector<1x1x3x3xf32>
    %3 = vector.shape_cast %2 : vector<1x1x3x3xf32> to vector<3x3xf32>
    %c0_6 = arith.constant 0 : index
    %c2 = arith.constant 2 : index
    %c0_7 = arith.constant 0 : index
    %c0_8 = arith.constant 0 : index
    %4 = vector.load %arg0[%c0_6, %c2, %c0_7, %c0_8] : memref<1x3x3x3xf32, #tpu.memory_space<vmem>>, vector<1x1x3x3xf32>
    %5 = vector.shape_cast %4 : vector<1x1x3x3xf32> to vector<3x3xf32>
    %c4 = arith.constant 4 : index
    %6 = memref.load %arg1[%c4] : memref<27xf32, #tpu.memory_space<smem>>
    %7 = vector.broadcast %6 : f32 to vector<3x3xf32>
    %8 = arith.mulf %7, %1 : vector<3x3xf32>
    %c13 = arith.constant 13 : index
    %9 = memref.load %arg1[%c13] : memref<27xf32, #tpu.memory_space<smem>>
    %10 = vector.broadcast %9 : f32 to vector<3x3xf32>
    %11 = arith.mulf %10, %3 : vector<3x3xf32>
    %12 = arith.addf %8, %11 : vector<3x3xf32>
    %c22 = arith.constant 22 : index
    %13 = memref.load %arg1[%c22] : memref<27xf32, #tpu.memory_space<smem>>
    %14 = vector.broadcast %13 : f32 to vector<3x3xf32>
    %15 = arith.mulf %14, %5 : vector<3x3xf32>
    %16 = arith.addf %12, %15 : vector<3x3xf32>
    %c3 = arith.constant 3 : index
    %17 = memref.load %arg1[%c3] : memref<27xf32, #tpu.memory_space<smem>>
    %18 = vector.broadcast %17 : f32 to vector<3x3xf32>
    %19 = arith.mulf %18, %1 : vector<3x3xf32>
    %c12 = arith.constant 12 : index
    %20 = memref.load %arg1[%c12] : memref<27xf32, #tpu.memory_space<smem>>
    %21 = vector.broadcast %20 : f32 to vector<3x3xf32>
    %22 = arith.mulf %21, %3 : vector<3x3xf32>
    %23 = arith.addf %19, %22 : vector<3x3xf32>
    %c21 = arith.constant 21 : index
    %24 = memref.load %arg1[%c21] : memref<27xf32, #tpu.memory_space<smem>>
    %25 = vector.broadcast %24 : f32 to vector<3x3xf32>
    %26 = arith.mulf %25, %5 : vector<3x3xf32>
    %27 = arith.addf %23, %26 : vector<3x3xf32>
    %28 = vector.extract_strided_slice %27 {offsets = [0, 1], sizes = [3, 2], strides = [1, 1]} : vector<3x3xf32> to vector<3x2xf32>
    %c5 = arith.constant 5 : index
    %29 = memref.load %arg1[%c5] : memref<27xf32, #tpu.memory_space<smem>>
    %30 = vector.broadcast %29 : f32 to vector<3x3xf32>
    %31 = arith.mulf %30, %1 : vector<3x3xf32>
    %c14 = arith.constant 14 : index
    %32 = memref.load %arg1[%c14] : memref<27xf32, #tpu.memory_space<smem>>
    %33 = vector.broadcast %32 : f32 to vector<3x3xf32>
    %34 = arith.mulf %33, %3 : vector<3x3xf32>
    %35 = arith.addf %31, %34 : vector<3x3xf32>
    %c23 = arith.constant 23 : index
    %36 = memref.load %arg1[%c23] : memref<27xf32, #tpu.memory_space<smem>>
    %37 = vector.broadcast %36 : f32 to vector<3x3xf32>
    %38 = arith.mulf %37, %5 : vector<3x3xf32>
    %39 = arith.addf %35, %38 : vector<3x3xf32>
    %40 = vector.extract_strided_slice %39 {offsets = [0, 0], sizes = [3, 2], strides = [1, 1]} : vector<3x3xf32> to vector<3x2xf32>
    %41 = arith.addf %28, %40 : vector<3x2xf32>
    %c1_9 = arith.constant 1 : index
    %42 = memref.load %arg1[%c1_9] : memref<27xf32, #tpu.memory_space<smem>>
    %43 = vector.broadcast %42 : f32 to vector<3x3xf32>
    %44 = arith.mulf %43, %1 : vector<3x3xf32>
    %c10 = arith.constant 10 : index
    %45 = memref.load %arg1[%c10] : memref<27xf32, #tpu.memory_space<smem>>
    %46 = vector.broadcast %45 : f32 to vector<3x3xf32>
    %47 = arith.mulf %46, %3 : vector<3x3xf32>
    %48 = arith.addf %44, %47 : vector<3x3xf32>
    %c19 = arith.constant 19 : index
    %49 = memref.load %arg1[%c19] : memref<27xf32, #tpu.memory_space<smem>>
    %50 = vector.broadcast %49 : f32 to vector<3x3xf32>
    %51 = arith.mulf %50, %5 : vector<3x3xf32>
    %52 = arith.addf %48, %51 : vector<3x3xf32>
    %53 = vector.extract_strided_slice %52 {offsets = [1, 0], sizes = [2, 3], strides = [1, 1]} : vector<3x3xf32> to vector<2x3xf32>
    %c7 = arith.constant 7 : index
    %54 = memref.load %arg1[%c7] : memref<27xf32, #tpu.memory_space<smem>>
    %55 = vector.broadcast %54 : f32 to vector<3x3xf32>
    %56 = arith.mulf %55, %1 : vector<3x3xf32>
    %c16 = arith.constant 16 : index
    %57 = memref.load %arg1[%c16] : memref<27xf32, #tpu.memory_space<smem>>
    %58 = vector.broadcast %57 : f32 to vector<3x3xf32>
    %59 = arith.mulf %58, %3 : vector<3x3xf32>
    %60 = arith.addf %56, %59 : vector<3x3xf32>
    %c25 = arith.constant 25 : index
    %61 = memref.load %arg1[%c25] : memref<27xf32, #tpu.memory_space<smem>>
    %62 = vector.broadcast %61 : f32 to vector<3x3xf32>
    %63 = arith.mulf %62, %5 : vector<3x3xf32>
    %64 = arith.addf %60, %63 : vector<3x3xf32>
    %65 = vector.extract_strided_slice %64 {offsets = [0, 0], sizes = [2, 3], strides = [1, 1]} : vector<3x3xf32> to vector<2x3xf32>
    %66 = arith.addf %53, %65 : vector<2x3xf32>
    %c0_10 = arith.constant 0 : index
    %67 = memref.load %arg1[%c0_10] : memref<27xf32, #tpu.memory_space<smem>>
    %68 = vector.broadcast %67 : f32 to vector<3x3xf32>
    %69 = arith.mulf %68, %1 : vector<3x3xf32>
    %c9 = arith.constant 9 : index
    %70 = memref.load %arg1[%c9] : memref<27xf32, #tpu.memory_space<smem>>
    %71 = vector.broadcast %70 : f32 to vector<3x3xf32>
    %72 = arith.mulf %71, %3 : vector<3x3xf32>
    %73 = arith.addf %69, %72 : vector<3x3xf32>
    %c18 = arith.constant 18 : index
    %74 = memref.load %arg1[%c18] : memref<27xf32, #tpu.memory_space<smem>>
    %75 = vector.broadcast %74 : f32 to vector<3x3xf32>
    %76 = arith.mulf %75, %5 : vector<3x3xf32>
    %77 = arith.addf %73, %76 : vector<3x3xf32>
    %78 = vector.extract_strided_slice %77 {offsets = [1, 1], sizes = [2, 2], strides = [1, 1]} : vector<3x3xf32> to vector<2x2xf32>
    %c2_11 = arith.constant 2 : index
    %79 = memref.load %arg1[%c2_11] : memref<27xf32, #tpu.memory_space<smem>>
    %80 = vector.broadcast %79 : f32 to vector<3x3xf32>
    %81 = arith.mulf %80, %1 : vector<3x3xf32>
    %c11 = arith.constant 11 : index
    %82 = memref.load %arg1[%c11] : memref<27xf32, #tpu.memory_space<smem>>
    %83 = vector.broadcast %82 : f32 to vector<3x3xf32>
    %84 = arith.mulf %83, %3 : vector<3x3xf32>
    %85 = arith.addf %81, %84 : vector<3x3xf32>
    %c20 = arith.constant 20 : index
    %86 = memref.load %arg1[%c20] : memref<27xf32, #tpu.memory_space<smem>>
    %87 = vector.broadcast %86 : f32 to vector<3x3xf32>
    %88 = arith.mulf %87, %5 : vector<3x3xf32>
    %89 = arith.addf %85, %88 : vector<3x3xf32>
    %90 = vector.extract_strided_slice %89 {offsets = [1, 0], sizes = [2, 2], strides = [1, 1]} : vector<3x3xf32> to vector<2x2xf32>
    %91 = arith.addf %78, %90 : vector<2x2xf32>
    %c6 = arith.constant 6 : index
    %92 = memref.load %arg1[%c6] : memref<27xf32, #tpu.memory_space<smem>>
    %93 = vector.broadcast %92 : f32 to vector<3x3xf32>
    %94 = arith.mulf %93, %1 : vector<3x3xf32>
    %c15 = arith.constant 15 : index
    %95 = memref.load %arg1[%c15] : memref<27xf32, #tpu.memory_space<smem>>
    %96 = vector.broadcast %95 : f32 to vector<3x3xf32>
    %97 = arith.mulf %96, %3 : vector<3x3xf32>
    %98 = arith.addf %94, %97 : vector<3x3xf32>
    %c24 = arith.constant 24 : index
    %99 = memref.load %arg1[%c24] : memref<27xf32, #tpu.memory_space<smem>>
    %100 = vector.broadcast %99 : f32 to vector<3x3xf32>
    %101 = arith.mulf %100, %5 : vector<3x3xf32>
    %102 = arith.addf %98, %101 : vector<3x3xf32>
    %103 = vector.extract_strided_slice %102 {offsets = [0, 1], sizes = [2, 2], strides = [1, 1]} : vector<3x3xf32> to vector<2x2xf32>
    %104 = arith.addf %91, %103 : vector<2x2xf32>
    %c8 = arith.constant 8 : index
    %105 = memref.load %arg1[%c8] : memref<27xf32, #tpu.memory_space<smem>>
    %106 = vector.broadcast %105 : f32 to vector<3x3xf32>
    %107 = arith.mulf %106, %1 : vector<3x3xf32>
    %c17 = arith.constant 17 : index
    %108 = memref.load %arg1[%c17] : memref<27xf32, #tpu.memory_space<smem>>
    %109 = vector.broadcast %108 : f32 to vector<3x3xf32>
    %110 = arith.mulf %109, %3 : vector<3x3xf32>
    %111 = arith.addf %107, %110 : vector<3x3xf32>
    %c26 = arith.constant 26 : index
    %112 = memref.load %arg1[%c26] : memref<27xf32, #tpu.memory_space<smem>>
    %113 = vector.broadcast %112 : f32 to vector<3x3xf32>
    %114 = arith.mulf %113, %5 : vector<3x3xf32>
    %115 = arith.addf %111, %114 : vector<3x3xf32>
    %116 = vector.extract_strided_slice %115 {offsets = [0, 0], sizes = [2, 2], strides = [1, 1]} : vector<3x3xf32> to vector<2x2xf32>
    %117 = arith.addf %104, %116 : vector<2x2xf32>
    %118 = vector.extract_strided_slice %16 {offsets = [0, 0], sizes = [3, 1], strides = [1, 1]} : vector<3x3xf32> to vector<3x1xf32>
    %119 = vector.extract_strided_slice %41 {offsets = [0, 0], sizes = [3, 1], strides = [1, 1]} : vector<3x2xf32> to vector<3x1xf32>
    %120 = vector.extract_strided_slice %16 {offsets = [0, 1], sizes = [3, 1], strides = [1, 1]} : vector<3x3xf32> to vector<3x1xf32>
    %121 = vector.extract_strided_slice %41 {offsets = [0, 1], sizes = [3, 1], strides = [1, 1]} : vector<3x2xf32> to vector<3x1xf32>
    %122 = vector.extract_strided_slice %16 {offsets = [0, 2], sizes = [3, 1], strides = [1, 1]} : vector<3x3xf32> to vector<3x1xf32>
    %123 = tpu.concatenate %118, %119, %120, %121, %122 in 1 : vector<3x1xf32>, vector<3x1xf32>, vector<3x1xf32>, vector<3x1xf32>, vector<3x1xf32> -> vector<3x5xf32>
    %124 = vector.extract_strided_slice %66 {offsets = [0, 0], sizes = [2, 1], strides = [1, 1]} : vector<2x3xf32> to vector<2x1xf32>
    %125 = vector.extract_strided_slice %117 {offsets = [0, 0], sizes = [2, 1], strides = [1, 1]} : vector<2x2xf32> to vector<2x1xf32>
    %126 = vector.extract_strided_slice %66 {offsets = [0, 1], sizes = [2, 1], strides = [1, 1]} : vector<2x3xf32> to vector<2x1xf32>
    %127 = vector.extract_strided_slice %117 {offsets = [0, 1], sizes = [2, 1], strides = [1, 1]} : vector<2x2xf32> to vector<2x1xf32>
    %128 = vector.extract_strided_slice %66 {offsets = [0, 2], sizes = [2, 1], strides = [1, 1]} : vector<2x3xf32> to vector<2x1xf32>
    %129 = tpu.concatenate %124, %125, %126, %127, %128 in 1 : vector<2x1xf32>, vector<2x1xf32>, vector<2x1xf32>, vector<2x1xf32>, vector<2x1xf32> -> vector<2x5xf32>
    %130 = vector.extract_strided_slice %123 {offsets = [0, 0], sizes = [1, 5], strides = [1, 1]} : vector<3x5xf32> to vector<1x5xf32>
    %131 = vector.extract_strided_slice %129 {offsets = [0, 0], sizes = [1, 5], strides = [1, 1]} : vector<2x5xf32> to vector<1x5xf32>
    %132 = vector.extract_strided_slice %123 {offsets = [1, 0], sizes = [1, 5], strides = [1, 1]} : vector<3x5xf32> to vector<1x5xf32>
    %133 = vector.extract_strided_slice %129 {offsets = [1, 0], sizes = [1, 5], strides = [1, 1]} : vector<2x5xf32> to vector<1x5xf32>
    %134 = vector.extract_strided_slice %123 {offsets = [2, 0], sizes = [1, 5], strides = [1, 1]} : vector<3x5xf32> to vector<1x5xf32>
    %135 = tpu.concatenate %130, %131, %132, %133, %134 in 0 : vector<1x5xf32>, vector<1x5xf32>, vector<1x5xf32>, vector<1x5xf32>, vector<1x5xf32> -> vector<5x5xf32>
    %c0_12 = arith.constant 0 : index
    %136 = memref.load %arg2[%c0_12] : memref<1xf32, #tpu.memory_space<smem>>
    %137 = vector.broadcast %136 : f32 to vector<5x5xf32>
    %138 = arith.addf %135, %137 : vector<5x5xf32>
    %139 = math.tanh %138 : vector<5x5xf32>
    %cst = arith.constant 0.0787247642 : f32
    %140 = vector.broadcast %cst : f32 to vector<5x5xf32>
    %141 = arith.mulf %139, %140 : vector<5x5xf32>
    %c0_13 = arith.constant 0 : index
    %c0_14 = arith.constant 0 : index
    %c0_15 = arith.constant 0 : index
    %c0_16 = arith.constant 0 : index
    %142 = vector.load %arg3[%c0_13, %c0_14, %c0_15, %c0_16] : memref<1x1x5x5xf32, #tpu.memory_space<vmem>>, vector<1x1x5x5xf32>
    %143 = vector.shape_cast %142 : vector<1x1x5x5xf32> to vector<5x5xf32>
    %144 = vector.shape_cast %141 : vector<5x5xf32> to vector<1x1x5x5xf32>
    tpu.vector_store %arg3[%c0_13, %c0_14, %c0_15, %c0_16], %144 {strides = array<i32>} : memref<1x1x5x5xf32, #tpu.memory_space<vmem>>, vector<1x1x5x5xf32>,
    return
  }
}

</mosaic_0001>

<llo_original>
// kernel: model_forward.1
$region0: #{model_forward.1}
  #allocation0 [shape = 'u32[]', space=smem, size = 0x4, offset = 0x4, fixed_abs, tag = 'smem constant byte address 0x4 - core index']
  #allocation1 [shape = 'u32[144,128]{1,0:T(1,128)}', space=vmem, size = 0x12000, scoped, tag = 'internal scratch']
  #allocation2 [shape = 'f32[1]{0:T(128)S(6)}', space=smem, size = 0x200, scoped, tag = 'scoped memory for model_forward.1']
  %s0 = inlined_call_operand.vmem [shape: f32[1,3,3,3], index: 0, kind: input, shape index: {}]
  %s1 = inlined_call_operand.vmem [shape: f32[27], index: 1, kind: input, shape index: {}]
  %s2 = inlined_call_operand.<no memory space> [shape: f32[1], index: 2, kind: input, shape index: {}]
  %s3 = inlined_call_operand.vmem [shape: f32[1,1,5,5], index: 3, kind: output, shape index: {}]
  %s4 = sld [smem:[#allocation0]]
  $region26: #{model_forward.1} parent=0
    _
  %s6 = ssub.s32 1, %s4
  %s7 = scalar_select 0, %s6, %s4
  %8 = sst [smem:[#allocation2]] %s2
  $region1: #{model_forward.1} parent=0
    #allocation3 [shape = 'u8[512]{0}', space=smem, size = 0x200, scoped, tag = 'input window, operand 1, single buffered']
    #allocation4 [shape = 's32[1]{0}', space=sflag, size = 0x4, scoped, tag = 'scoped memory for model_forward.1']
    %9 = vsyncpa [#allocation4], 0
    // Predicated region
    $region2: #{model_forward.1} parent=1 // pred_check
      _
    $region3: #{model_forward.1} parent=1 // pred_check_branch
      %11 = sbr.rel (0) target = $region5
    $region4: #{model_forward.1} parent=1 // pred_region
      _
    $region5: #{model_forward.1} parent=1 // pred_fallthru
      _
    // Predicated region
    $region6: #{model_forward.1} parent=1 // pred_check
      _
    $region7: #{model_forward.1} parent=1 // pred_check_branch
      %13 = sbr.rel (0) target = $region9
    $region8: #{model_forward.1} parent=1 // pred_region
      %s15 = ssub.s32 16, 16
      %16 = vsyncadd [#allocation4], %s15
      %s18 = sshll.u32 %s1, 4
      %s19 = int_to_ptr.vmem [resolvable:$true] %s18
      %21 = dma.vmem_to_smem %s19, 16, [#allocation3], [#allocation4]
    $region9: #{model_forward.1} parent=1 // pred_fallthru
      _
    // Predicated region
    $region10: #{model_forward.1} parent=1 // pred_check
      _
    $region11: #{model_forward.1} parent=1 // pred_check_branch
      %23 = sbr.rel (0) target = $region13
    $region12: #{model_forward.1} parent=1 // pred_region
      _
    $region13: #{model_forward.1} parent=1 // pred_fallthru
      _
    // Predicated region
    $region14: #{model_forward.1} parent=1 // pred_check
      _
    $region15: #{model_forward.1} parent=1 // pred_check_branch
      %25 = sbr.rel (0) target = $region17
    $region16: #{model_forward.1} parent=1 // pred_region
      %26 = dma.done [#allocation4], 16
    $region17: #{model_forward.1} parent=1 // pred_fallthru
      _
    %27 = sfence
    %v28 = vld [vmem:[%s0] sm:$0x7]
    %s29 = scalar_lea.vmem %s0, 4
    %v30 = vld [vmem:[%s29] sm:$0x7]
    %s31 = scalar_lea.vmem %s0, 8
    %v32 = vld [vmem:[%s31] sm:$0x7]
    %s33 = sld [smem:[#allocation3 + $0x4]]
    %v34 = vstv %s33
    %v35 = vmul.f32 %v34, %v28
    %s36 = sld [smem:[#allocation3 + $0xd]]
    %v37 = vstv %s36
    %v38 = vmul.f32 %v37, %v30
    %v39 = vadd.f32 %v35, %v38
    %s40 = sld [smem:[#allocation3 + $0x16]]
    %v41 = vstv %s40
    %v42 = vmul.f32 %v41, %v32
    %v43 = vadd.f32 %v39, %v42
    %s44 = sld [smem:[#allocation3 + $0x3]]
    %v45 = vstv %s44
    %v46 = vmul.f32 %v45, %v28
    %s47 = sld [smem:[#allocation3 + $0xc]]
    %v48 = vstv %s47
    %v49 = vmul.f32 %v48, %v30
    %v50 = vadd.f32 %v46, %v49
    %s51 = sld [smem:[#allocation3 + $0x15]]
    %v52 = vstv %s51
    %v53 = vmul.f32 %v52, %v32
    %v54 = vadd.f32 %v50, %v53
    %s55 = sld [smem:[#allocation3 + $0x5]]
    %v56 = vstv %s55
    %v57 = vmul.f32 %v56, %v28
    %s58 = sld [smem:[#allocation3 + $0xe]]
    %v59 = vstv %s58
    %v60 = vmul.f32 %v59, %v30
    %v61 = vadd.f32 %v57, %v60
    %s62 = sld [smem:[#allocation3 + $0x17]]
    %v63 = vstv %s62
    %v64 = vmul.f32 %v63, %v32
    %v65 = vadd.f32 %v61, %v64
    %67 = vrot.lane.b32.xlu0 %v65, 1
    %v68 = vpop.permute.xlu0 %67
    %v70 = vadd.f32 %v54, %v68
    %s71 = sld [smem:[#allocation3 + $0x1]]
    %v72 = vstv %s71
    %v73 = vmul.f32 %v72, %v28
    %s74 = sld [smem:[#allocation3 + $0xa]]
    %v75 = vstv %s74
    %v76 = vmul.f32 %v75, %v30
    %v77 = vadd.f32 %v73, %v76
    %s78 = sld [smem:[#allocation3 + $0x13]]
    %v79 = vstv %s78
    %v80 = vmul.f32 %v79, %v32
    %v81 = vadd.f32 %v77, %v80
    %s82 = sld [smem:[#allocation3 + $0x7]]
    %v83 = vstv %s82
    %v84 = vmul.f32 %v83, %v28
    %s85 = sld [smem:[#allocation3 + $0x10]]
    %v86 = vstv %s85
    %v87 = vmul.f32 %v86, %v30
    %v88 = vadd.f32 %v84, %v87
    %s89 = sld [smem:[#allocation3 + $0x19]]
    %v90 = vstv %s89
    %v91 = vmul.f32 %v90, %v32
    %v92 = vadd.f32 %v88, %v91
    %v94 = vrot.slane %v92, 7
    %v96 = vadd.f32 %v81, %v94
    %s97 = sld [smem:[#allocation3]]
    %v98 = vstv %s97
    %v99 = vmul.f32 %v98, %v28
    %s100 = sld [smem:[#allocation3 + $0x9]]
    %v101 = vstv %s100
    %v102 = vmul.f32 %v101, %v30
    %v103 = vadd.f32 %v99, %v102
    %s104 = sld [smem:[#allocation3 + $0x12]]
    %v105 = vstv %s104
    %v106 = vmul.f32 %v105, %v32
    %v107 = vadd.f32 %v103, %v106
    %s108 = sld [smem:[#allocation3 + $0x2]]
    %v109 = vstv %s108
    %v110 = vmul.f32 %v109, %v28
    %s111 = sld [smem:[#allocation3 + $0xb]]
    %v112 = vstv %s111
    %v113 = vmul.f32 %v112, %v30
    %v114 = vadd.f32 %v110, %v113
    %s115 = sld [smem:[#allocation3 + $0x14]]
    %v116 = vstv %s115
    %v117 = vmul.f32 %v116, %v32
    %v118 = vadd.f32 %v114, %v117
    %120 = vrot.lane.b32.xlu0 %v118, 1
    %v121 = vpop.permute.xlu0 %120
    %v123 = vadd.f32 %v107, %v121
    %s124 = sld [smem:[#allocation3 + $0x6]]
    %v125 = vstv %s124
    %v126 = vmul.f32 %v125, %v28
    %s127 = sld [smem:[#allocation3 + $0xf]]
    %v128 = vstv %s127
    %v129 = vmul.f32 %v128, %v30
    %v130 = vadd.f32 %v126, %v129
    %s131 = sld [smem:[#allocation3 + $0x18]]
    %v132 = vstv %s131
    %v133 = vmul.f32 %v132, %v32
    %v134 = vadd.f32 %v130, %v133
    %v136 = vrot.slane %v134, 7
    %v138 = vadd.f32 %v123, %v136
    %s139 = sld [smem:[#allocation3 + $0x8]]
    %v140 = vstv %s139
    %v141 = vmul.f32 %v140, %v28
    %s142 = sld [smem:[#allocation3 + $0x11]]
    %v143 = vstv %s142
    %v144 = vmul.f32 %v143, %v30
    %v145 = vadd.f32 %v141, %v144
    %s146 = sld [smem:[#allocation3 + $0x1a]]
    %v147 = vstv %s146
    %v148 = vmul.f32 %v147, %v32
    %v149 = vadd.f32 %v145, %v148
    %v151 = vrot.slane %v149, 7
    %152 = vrot.lane.b32.xlu0 %v151, 1
    %v153 = vpop.permute.xlu0 %152
    %v155 = vadd.f32 %v138, %v153
    %157 = vrot.lane.b32.xlu0 %v43, 1
    %v158 = vpop.permute.xlu0 %157
    %161 = vrot.lane.b32.xlu0 %v70, 1
    %v162 = vpop.permute.xlu0 %161
    %164 = vrot.lane.b32.xlu0 %v43, 2
    %v165 = vpop.permute.xlu0 %164
    %vm167 = vcmask 7168
    %v168 = vsel %vm167, %v43, %v70
    %vm169 = vcmask 15360
    %v170 = vsel %vm169, %v168, %v158
    %vm171 = vcmask 23552
    %v172 = vsel %vm171, %v170, %v162
    %vm173 = vcmask 31744
    %v174 = vsel %vm173, %v172, %v165
    %176 = vrot.lane.b32.xlu0 %v96, 1
    %v177 = vpop.permute.xlu0 %176
    %180 = vrot.lane.b32.xlu0 %v155, 1
    %v181 = vpop.permute.xlu0 %180
    %183 = vrot.lane.b32.xlu0 %v96, 2
    %v184 = vpop.permute.xlu0 %183
    %v186 = vsel %vm167, %v96, %v155
    %v187 = vsel %vm169, %v186, %v177
    %v188 = vsel %vm171, %v187, %v181
    %v189 = vsel %vm173, %v188, %v184
    %v191 = vrot.slane %v174, 7
    %v194 = vrot.slane %v189, 7
    %v196 = vrot.slane %v174, 6
    %vm198 = vcmask 1040384
    %v199 = vsel %vm198, %v174, %v189
    %vm200 = vcmask 1041408
    %v201 = vsel %vm200, %v199, %v191
    %vm202 = vcmask 1042432
    %v203 = vsel %vm202, %v201, %v194
    %vm204 = vcmask 1043456
    %v205 = vsel %vm204, %v203, %v196
    %s206 = sld [smem:[#allocation2]]
    %v207 = vstv %s206
    %v208 = vadd.f32 %v205, %v207
    %v209 = vtanh.pop %v208
    %v210 = vmul.f32 %v209, 0.078724764
    %vm211 = vcmask 36864
    %212 = vst.msk [vmem:[%s3] sm:$0x1f] %vm211, %v210
    // Predicated region
    $region18: #{model_forward.1} parent=1 // pred_check
      _
    $region19: #{model_forward.1} parent=1 // pred_check_branch
      %214 = sbr.rel (0) target = $region21
    $region20: #{model_forward.1} parent=1 // pred_region
      _
    $region21: #{model_forward.1} parent=1 // pred_fallthru
      _
    // Predicated region
    $region22: #{model_forward.1} parent=1 // pred_check
      _
    $region23: #{model_forward.1} parent=1 // pred_check_branch
      %216 = sbr.rel (0) target = $region25
    $region24: #{model_forward.1} parent=1 // pred_region
      _
    $region25: #{model_forward.1} parent=1 // pred_fallthru
      _
    %217 = vsyncpa [#allocation4], 1

</llo_original>
